<compile_context>
chip_gen: v7x
topology: tpu7x:2x2x1
jax: 0.10.0
libtpu: 0.0.40
codegen_flags: <defaults>
</compile_context>

<pallas_src>
import jax
import jax.numpy as jnp
from jax.experimental import pallas as pl
from jax.experimental.pallas import tpu as pltpu

EPS = 1e-5


def _revin_norm_kernel(x_ref, w_ref, b_ref, y_ref, mean_ref, std_ref):
    # x_ref/y_ref: (TB, T, C); w_ref/b_ref: (1, C); mean_ref/std_ref: (TB, 1, C)
    x = x_ref[...].astype(jnp.float32)
    inv_t = 1.0 / x.shape[1]
    mean = jnp.sum(x, axis=1, keepdims=True) * inv_t           # (TB, 1, C)
    d = x - mean
    var = jnp.sum(d * d, axis=1, keepdims=True) * inv_t        # biased (unbiased=False)
    std = jnp.sqrt(var + EPS)
    w = w_ref[...][None, :, :]                                 # (1, 1, C)
    b = b_ref[...][None, :, :]
    scale = w / std                                            # per-(batch, channel) only
    # (x - mean) / std * w + b  ==  d * scale + b  : one mul + one add / element
    y_ref[...] = (d * scale + b).astype(y_ref.dtype)
    mean_ref[...] = mean.astype(mean_ref.dtype)
    std_ref[...] = std.astype(std_ref.dtype)


def _revin_denorm_kernel(x_ref, mean_ref, std_ref, w_ref, b_ref, y_ref):
    # x_ref/y_ref: (TB, T, C); mean/std: (TB, 1, C); w/b: (1, C)
    x = x_ref[...].astype(jnp.float32)
    w = w_ref[...][None, :, :]
    b = b_ref[...][None, :, :]
    # ((x - b) / w) * std + mean  ==  x * (std/w) + (mean - b*std/w)
    scale = std_ref[...] / w                                   # per-channel divide only
    shift = mean_ref[...] - b * scale
    y_ref[...] = (x * scale + shift).astype(y_ref.dtype)


def _tpu_config():
    """(vmem_capacity_bytes, tensorcores_per_chip) with safe fallbacks."""
    vmem_cap = 128 * 1024 * 1024
    cores = 1
    try:
        info = pltpu.get_tpu_info()
        vmem_cap = int(getattr(info, "vmem_capacity_bytes", vmem_cap))
    except Exception:
        pass
    try:
        kind = jax.devices()[0].device_kind.lower()
        if "v7" in kind or "7x" in kind:
            cores = 2
    except Exception:
        pass
    return vmem_cap, cores


def _pick_batch_block(B, T, C, itemsize, vmem_cap, num_cores):
    # Padded VMEM tile sizes for a (tb, T, C) block: T sits on sublanes
    # (pad to 8 / 16 / 32 for 4 / 2 / 1-byte dtypes), C on lanes (pad to 128).
    sub_mult = {4: 8, 2: 16, 1: 32}.get(itemsize, 8)
    t_pad = pl.cdiv(T, sub_mult) * sub_mult
    c_pad = pl.cdiv(C, 128) * 128
    # Per-batch-row bytes: double-buffered in + out blocks at the I/O dtype
    # (4 * itemsize) plus ~2 full-block f32 temporaries (x, x - mean) (+8).
    per_batch = t_pad * c_pad * (4 * itemsize + 8)
    budget = (vmem_cap * 3) // 8        # ~48 MiB on 128 MiB chips, ~24 MiB on v7x
    tb = max(1, min(B, budget // max(per_batch, 1)))
    # TODO(synk): T-tiled two-pass fallback (stats pass + normalize pass) for
    #             sequences whose single (T, C_pad) row exceeds the budget
    #             (long-T on v7x); current path needs full T in one block.
    if num_cores > 1 and B > 1:
        # Keep an even number of grid steps so both v7x TensorCores stay busy.
        steps = pl.cdiv(B, tb)
        if steps % 2 == 1:
            steps += 1
        tb = max(1, min(tb, pl.cdiv(B, steps)))
    return int(tb)


def revin_norm(x, weight, bias):
    """x: (B, T, C). Returns (y, mean, stdev); mean/stdev shaped (B, 1, C)."""
    B, T, C = x.shape
    w2 = weight.reshape(1, C).astype(jnp.float32)
    b2 = bias.reshape(1, C).astype(jnp.float32)
    vmem_cap, cores = _tpu_config()
    tb = _pick_batch_block(B, T, C, x.dtype.itemsize, vmem_cap, cores)
    y, mean, std = pl.pallas_call(
        _revin_norm_kernel,
        out_shape=(
            jax.ShapeDtypeStruct((B, T, C), x.dtype),
            jax.ShapeDtypeStruct((B, 1, C), jnp.float32),
            jax.ShapeDtypeStruct((B, 1, C), jnp.float32),
        ),
        grid=(pl.cdiv(B, tb),),
        in_specs=[
            pl.BlockSpec((tb, T, C), lambda i: (i, 0, 0)),
            pl.BlockSpec((1, C), lambda i: (0, 0)),
            pl.BlockSpec((1, C), lambda i: (0, 0)),
        ],
        out_specs=(
            pl.BlockSpec((tb, T, C), lambda i: (i, 0, 0)),
            pl.BlockSpec((tb, 1, C), lambda i: (i, 0, 0)),
            pl.BlockSpec((tb, 1, C), lambda i: (i, 0, 0)),
        ),
        compiler_params=pltpu.CompilerParams(
            dimension_semantics=("parallel",),
            vmem_limit_bytes=(vmem_cap * 3) // 4),
    )(x, w2, b2)
    return y, mean, std


def revin_denorm(x, mean, std, weight, bias):
    """Inverse of revin_norm. x: (B, T, C); mean/std: (B, 1, C)."""
    B, T, C = x.shape
    w2 = weight.reshape(1, C).astype(jnp.float32)
    b2 = bias.reshape(1, C).astype(jnp.float32)
    mean = mean.astype(jnp.float32)
    std = std.astype(jnp.float32)
    vmem_cap, cores = _tpu_config()
    tb = _pick_batch_block(B, T, C, x.dtype.itemsize, vmem_cap, cores)
    return pl.pallas_call(
        _revin_denorm_kernel,
        out_shape=jax.ShapeDtypeStruct((B, T, C), x.dtype),
        grid=(pl.cdiv(B, tb),),
        in_specs=[
            pl.BlockSpec((tb, T, C), lambda i: (i, 0, 0)),
            pl.BlockSpec((tb, 1, C), lambda i: (i, 0, 0)),
            pl.BlockSpec((tb, 1, C), lambda i: (i, 0, 0)),
            pl.BlockSpec((1, C), lambda i: (0, 0)),
            pl.BlockSpec((1, C), lambda i: (0, 0)),
        ],
        out_specs=pl.BlockSpec((tb, T, C), lambda i: (i, 0, 0)),
        compiler_params=pltpu.CompilerParams(
            dimension_semantics=("parallel",),
            vmem_limit_bytes=(vmem_cap * 3) // 4),
    )(x, mean, std, w2, b2)


def _run_case(key, B, T, C):
    kx, kw, kb = jax.random.split(key, 3)
    # Offset well away from zero so the two-pass variance path is exercised.
    x = jax.random.normal(kx, (B, T, C), dtype=jnp.float32) * 3.0 + 1.5
    # Module init is ones/zeros; perturb slightly so the affine path is tested.
    affine_weight = jnp.ones((C,), jnp.float32) + 0.1 * jax.random.normal(kw, (C,))
    affine_bias = jnp.zeros((C,), jnp.float32) + 0.1 * jax.random.normal(kb, (C,))

    # mode == 'norm'
    y, mean, std = revin_norm(x, affine_weight, affine_bias)
    # mode == 'denorm' (round trip)
    x_rec = revin_denorm(y, mean, std, affine_weight, affine_bias)
    jax.block_until_ready((y, mean, std, x_rec))

    # Plain-JAX reference (matches torch: biased var over dim 1, keepdim).
    ref_mean = jnp.mean(x, axis=1, keepdims=True)
    ref_var = jnp.mean((x - ref_mean) ** 2, axis=1, keepdims=True)
    ref_std = jnp.sqrt(ref_var + EPS)
    ref_y = (x - ref_mean) / ref_std * affine_weight[None, None, :] \
            + affine_bias[None, None, :]

    assert jnp.allclose(mean, ref_mean, atol=1e-5, rtol=1e-5)
    assert jnp.allclose(std, ref_std, atol=1e-5, rtol=1e-5)
    assert jnp.allclose(y, ref_y, atol=1e-5, rtol=1e-5)
    assert jnp.allclose(x_rec, x, atol=1e-4, rtol=1e-4)


if __name__ == "__main__":
    key = jax.random.PRNGKey(0)
    k1, k2 = jax.random.split(key)
    _run_case(k1, B=2, T=8, C=4)    # small shape matching the module spec
    _run_case(k2, B=4, T=16, C=6)   # unaligned C/T, multi-batch blocks
    print("KERNEL_OK")
</pallas_src>

<mosaic_0001>
module attributes {stable_mosaic.version = 11 : i64} {
  func.func @_revin_norm_kernel(%arg0: i32, %arg1: memref<2x8x4xf32, #tpu.memory_space<vmem>>, %arg2: memref<1x4xf32, #tpu.memory_space<vmem>>, %arg3: memref<1x4xf32, #tpu.memory_space<vmem>>, %arg4: memref<2x8x4xf32, #tpu.memory_space<vmem>>, %arg5: memref<2x1x4xf32, #tpu.memory_space<vmem>>, %arg6: memref<2x1x4xf32, #tpu.memory_space<vmem>>) attributes {dimension_semantics = [#tpu.dimension_semantics<parallel>], iteration_bounds = array<i64: 1>, scalar_prefetch = 0 : i64, scratch_operands = 0 : i64, tpu.core_type = #tpu.core_type<tc>, window_params = [{transform_indices = @transform_0, window_bounds = array<i64: 2, 8, 4>}, {pipeline_mode = #tpu.pipeline_mode<synchronous>, transform_indices = @transform_1, window_bounds = array<i64: 1, 4>}, {pipeline_mode = #tpu.pipeline_mode<synchronous>, transform_indices = @transform_2, window_bounds = array<i64: 1, 4>}, {transform_indices = @transform_3, window_bounds = array<i64: 2, 8, 4>}, {transform_indices = @transform_4, window_bounds = array<i64: 2, 1, 4>}, {transform_indices = @transform_5, window_bounds = array<i64: 2, 1, 4>}]} {
    %c0 = arith.constant 0 : index
    %c0_0 = arith.constant 0 : index
    %c0_1 = arith.constant 0 : index
    %0 = vector.load %arg1[%c0, %c0_0, %c0_1] : memref<2x8x4xf32, #tpu.memory_space<vmem>>, vector<2x8x4xf32>
    %cst = arith.constant dense<0.000000e+00> : vector<2x4xf32>
    %1 = vector.multi_reduction <add>, %0, %cst [1] : vector<2x8x4xf32> to vector<2x4xf32>
    %2 = vector.shape_cast %1 : vector<2x4xf32> to vector<2x1x4xf32>
    %cst_2 = arith.constant 1.250000e-01 : f32
    %3 = vector.broadcast %cst_2 : f32 to vector<2x1x4xf32>
    %4 = arith.mulf %2, %3 : vector<2x1x4xf32>
    %5 = vector.broadcast %4 : vector<2x1x4xf32> to vector<2x8x4xf32>
    %6 = arith.subf %0, %5 : vector<2x8x4xf32>
    %7 = arith.mulf %6, %6 : vector<2x8x4xf32>
    %cst_3 = arith.constant dense<0.000000e+00> : vector<2x4xf32>
    %8 = vector.multi_reduction <add>, %7, %cst_3 [1] : vector<2x8x4xf32> to vector<2x4xf32>
    %9 = vector.shape_cast %8 : vector<2x4xf32> to vector<2x1x4xf32>
    %cst_4 = arith.constant 1.250000e-01 : f32
    %10 = vector.broadcast %cst_4 : f32 to vector<2x1x4xf32>
    %11 = arith.mulf %9, %10 : vector<2x1x4xf32>
    %cst_5 = arith.constant 9.99999974E-6 : f32
    %12 = vector.broadcast %cst_5 : f32 to vector<2x1x4xf32>
    %13 = arith.addf %11, %12 : vector<2x1x4xf32>
    %14 = math.sqrt %13 : vector<2x1x4xf32>
    %c0_6 = arith.constant 0 : index
    %c0_7 = arith.constant 0 : index
    %15 = vector.load %arg2[%c0_6, %c0_7] : memref<1x4xf32, #tpu.memory_space<vmem>>, vector<1x4xf32>
    %16 = vector.shape_cast %15 : vector<1x4xf32> to vector<1x1x4xf32>
    %c0_8 = arith.constant 0 : index
    %c0_9 = arith.constant 0 : index
    %17 = vector.load %arg3[%c0_8, %c0_9] : memref<1x4xf32, #tpu.memory_space<vmem>>, vector<1x4xf32>
    %18 = vector.shape_cast %17 : vector<1x4xf32> to vector<1x1x4xf32>
    %19 = vector.broadcast %16 : vector<1x1x4xf32> to vector<2x1x4xf32>
    %20 = arith.divf %19, %14 : vector<2x1x4xf32>
    %21 = vector.broadcast %20 : vector<2x1x4xf32> to vector<2x8x4xf32>
    %22 = arith.mulf %6, %21 : vector<2x8x4xf32>
    %23 = vector.broadcast %18 : vector<1x1x4xf32> to vector<2x8x4xf32>
    %24 = arith.addf %22, %23 : vector<2x8x4xf32>
    %c0_10 = arith.constant 0 : index
    %c0_11 = arith.constant 0 : index
    %c0_12 = arith.constant 0 : index
    %25 = vector.load %arg4[%c0_10, %c0_11, %c0_12] : memref<2x8x4xf32, #tpu.memory_space<vmem>>, vector<2x8x4xf32>
    tpu.vector_store %arg4[%c0_10, %c0_11, %c0_12], %24 {strides = array<i32>} : memref<2x8x4xf32, #tpu.memory_space<vmem>>, vector<2x8x4xf32>,
    %c0_13 = arith.constant 0 : index
    %c0_14 = arith.constant 0 : index
    %c0_15 = arith.constant 0 : index
    %26 = vector.load %arg5[%c0_13, %c0_14, %c0_15] : memref<2x1x4xf32, #tpu.memory_space<vmem>>, vector<2x1x4xf32>
    tpu.vector_store %arg5[%c0_13, %c0_14, %c0_15], %4 {strides = array<i32>} : memref<2x1x4xf32, #tpu.memory_space<vmem>>, vector<2x1x4xf32>,
    %c0_16 = arith.constant 0 : index
    %c0_17 = arith.constant 0 : index
    %c0_18 = arith.constant 0 : index
    %27 = vector.load %arg6[%c0_16, %c0_17, %c0_18] : memref<2x1x4xf32, #tpu.memory_space<vmem>>, vector<2x1x4xf32>
    tpu.vector_store %arg6[%c0_16, %c0_17, %c0_18], %14 {strides = array<i32>} : memref<2x1x4xf32, #tpu.memory_space<vmem>>, vector<2x1x4xf32>,
    return
  }
  func.func @transform_0(%arg0: i32) -> (i32, i32, i32) {
    %c0_i32 = arith.constant 0 : i32
    %c0_i32_0 = arith.constant 0 : i32
    %c0_i32_1 = arith.constant 0 : i32
    return %arg0, %c0_i32, %c0_i32_0 : i32, i32, i32
  }
  func.func @transform_1(%arg0: i32) -> (i32, i32) {
    %c0_i32 = arith.constant 0 : i32
    %c0_i32_0 = arith.constant 0 : i32
    %c0_i32_1 = arith.constant 0 : i32
    return %c0_i32, %c0_i32_0 : i32, i32
  }
  func.func @transform_2(%arg0: i32) -> (i32, i32) {
    %c0_i32 = arith.constant 0 : i32
    %c0_i32_0 = arith.constant 0 : i32
    %c0_i32_1 = arith.constant 0 : i32
    return %c0_i32, %c0_i32_0 : i32, i32
  }
  func.func @transform_3(%arg0: i32) -> (i32, i32, i32) {
    %c0_i32 = arith.constant 0 : i32
    %c0_i32_0 = arith.constant 0 : i32
    %c0_i32_1 = arith.constant 0 : i32
    return %arg0, %c0_i32, %c0_i32_0 : i32, i32, i32
  }
  func.func @transform_4(%arg0: i32) -> (i32, i32, i32) {
    %c0_i32 = arith.constant 0 : i32
    %c0_i32_0 = arith.constant 0 : i32
    %c0_i32_1 = arith.constant 0 : i32
    return %arg0, %c0_i32, %c0_i32_0 : i32, i32, i32
  }
  func.func @transform_5(%arg0: i32) -> (i32, i32, i32) {
    %c0_i32 = arith.constant 0 : i32
    %c0_i32_0 = arith.constant 0 : i32
    %c0_i32_1 = arith.constant 0 : i32
    return %arg0, %c0_i32, %c0_i32_0 : i32, i32, i32
  }
}

</mosaic_0001>

<llo_original>
// kernel: tpu_custom_call.1
$region0: #{tpu_custom_call.1}
  #allocation0 [shape = 'u32[]', space=smem, size = 0x4, offset = 0x4, fixed_abs, tag = 'smem constant byte address 0x4 - core index']
  #allocation1 [shape = 'u32[144,128]{1,0:T(1,128)}', space=vmem, size = 0x12000, scoped, tag = 'internal scratch']
  %s0 = inlined_call_operand.hbm [shape: f32[2,8,4], index: 0, kind: input, shape index: {}]
  %s1 = inlined_call_operand.hbm [shape: f32[1,4], index: 1, kind: input, shape index: {}]
  %s2 = inlined_call_operand.hbm [shape: f32[1,4], index: 2, kind: input, shape index: {}]
  %s3 = inlined_call_operand.hbm [shape: f32[2,8,4], index: 3, kind: output, shape index: {0}]
  %s4 = inlined_call_operand.hbm [shape: f32[2,1,4], index: 4, kind: output, shape index: {1}]
  %s5 = inlined_call_operand.hbm [shape: f32[2,1,4], index: 5, kind: output, shape index: {2}]
  %6 = xla_tuple %s3, %s4, %s5
  %s7 = sld [smem:[#allocation0]]
  $region50: #{tpu_custom_call.1} parent=0
    _
  %s9 = ssub.s32 1, %s7
  %s10 = scalar_select 0, %s9, %s7
  $region1: #{tpu_custom_call.1} parent=0
    #allocation2 [shape = 'u8[8192]{0}', space=vmem, size = 0x2000, scoped, tag = 'input window, operand 0, single buffered']
    #allocation3 [shape = 's32[1]{0}', space=sflag, size = 0x4, scoped, tag = 'scoped memory for tpu_custom_call.1']
    #allocation4 [shape = 's32[1]{0}', space=sflag, size = 0x4, scoped, tag = 'scoped memory for tpu_custom_call.1']
    #allocation5 [shape = 'u8[512]{0}', space=vmem, size = 0x400, scoped, tag = 'input window, operand 1, single buffered']
    #allocation6 [shape = 's32[1]{0}', space=sflag, size = 0x4, scoped, tag = 'scoped memory for tpu_custom_call.1']
    #allocation7 [shape = 'u8[512]{0}', space=vmem, size = 0x400, scoped, tag = 'input window, operand 2, single buffered']
    #allocation8 [shape = 'u8[8192]{0}', space=vmem, size = 0x2000, scoped, tag = 'output window, operand 0, single buffered']
    #allocation9 [shape = 'u8[1024]{0}', space=vmem, size = 0x400, scoped, tag = 'output window, operand 1, single buffered']
    #allocation10 [shape = 's32[1]{0}', space=sflag, size = 0x4, scoped, tag = 'scoped memory for tpu_custom_call.1']
    #allocation11 [shape = 'u8[1024]{0}', space=vmem, size = 0x400, scoped, tag = 'output window, operand 2, single buffered']
    %11 = vsyncpa [#allocation3], 0
    %12 = vsyncpa [#allocation6], 0
    %13 = vsyncpa [#allocation4], 0
    %14 = vsyncpa [#allocation10], 0
    // Predicated region
    $region2: #{tpu_custom_call.1} parent=1 // pred_check
      _
    $region3: #{tpu_custom_call.1} parent=1 // pred_check_branch
      %16 = sbr.rel (0) target = $region5
    $region4: #{tpu_custom_call.1} parent=1 // pred_region
      %s18 = ssub.s32 256, 256
      %19 = vsyncadd [#allocation3], %s18
      %s20 = sshll.u32 [#allocation2], 4
      %s21 = int_to_ptr.vmem [resolvable:$true] %s20
      %26 = dma.hbm_to_vmem [thread:$0]  %s0, 256, %s21, [#allocation3], 128, 128, 8
    $region5: #{tpu_custom_call.1} parent=1 // pred_fallthru
      _
    // Predicated region
    $region6: #{tpu_custom_call.1} parent=1 // pred_check
      _
    $region7: #{tpu_custom_call.1} parent=1 // pred_check_branch
      %28 = sbr.rel (0) target = $region9
    $region8: #{tpu_custom_call.1} parent=1 // pred_region
      %s30 = ssub.s32 16, 16
      %31 = vsyncadd [#allocation6], %s30
      %s33 = sshll.u32 [#allocation5], 4
      %s34 = int_to_ptr.vmem [resolvable:$true] %s33
      %36 = dma.hbm_to_vmem [thread:$0]  %s1, 16, %s34, [#allocation6]
    $region9: #{tpu_custom_call.1} parent=1 // pred_fallthru
      _
    // Predicated region
    $region10: #{tpu_custom_call.1} parent=1 // pred_check
      _
    $region11: #{tpu_custom_call.1} parent=1 // pred_check_branch
      %38 = sbr.rel (0) target = $region13
    $region12: #{tpu_custom_call.1} parent=1 // pred_region
      %s40 = ssub.s32 16, 16
      %41 = vsyncadd [#allocation6], %s40
      %s43 = sshll.u32 [#allocation7], 4
      %s44 = int_to_ptr.vmem [resolvable:$true] %s43
      %46 = dma.hbm_to_vmem [thread:$0]  %s2, 16, %s44, [#allocation6]
    $region13: #{tpu_custom_call.1} parent=1 // pred_fallthru
      _
    // Predicated region
    $region14: #{tpu_custom_call.1} parent=1 // pred_check
      _
    $region15: #{tpu_custom_call.1} parent=1 // pred_check_branch
      %48 = sbr.rel (0) target = $region17
    $region16: #{tpu_custom_call.1} parent=1 // pred_region
      %49 = dma.done [#allocation3], 256
    $region17: #{tpu_custom_call.1} parent=1 // pred_fallthru
      _
    // Predicated region
    $region18: #{tpu_custom_call.1} parent=1 // pred_check
      _
    $region19: #{tpu_custom_call.1} parent=1 // pred_check_branch
      %51 = sbr.rel (0) target = $region21
    $region20: #{tpu_custom_call.1} parent=1 // pred_region
      %52 = dma.done [#allocation6], 16
    $region21: #{tpu_custom_call.1} parent=1 // pred_fallthru
      _
    // Predicated region
    $region22: #{tpu_custom_call.1} parent=1 // pred_check
      _
    $region23: #{tpu_custom_call.1} parent=1 // pred_check_branch
      %54 = sbr.rel (0) target = $region25
    $region24: #{tpu_custom_call.1} parent=1 // pred_region
      %55 = dma.done [#allocation6], 16
    $region25: #{tpu_custom_call.1} parent=1 // pred_fallthru
      _
    %v56 = vld [vmem:[#allocation2] sm:$0xff]
    %v57 = vld [vmem:[#allocation2 + $0x8] sm:$0xff]
    %vm58 = vcmask 31744
    %v59 = vsel %vm58, %v56, 0.0
    %v60 = vrot.slane %v59, 4
    %v61 = vadd.f32 %v59, %v60
    %v62 = vrot.slane %v61, 2
    %v63 = vadd.f32 %v61, %v62
    %v64 = vrot.slane %v63, 1
    %v65 = vadd.f32 %v63, %v64
    %v66 = vsel %vm58, %v57, 0.0
    %v67 = vrot.slane %v66, 4
    %v68 = vadd.f32 %v66, %v67
    %v69 = vrot.slane %v68, 2
    %v70 = vadd.f32 %v68, %v69
    %v71 = vrot.slane %v70, 1
    %v72 = vadd.f32 %v70, %v71
    %v73 = vmul.f32 %v65, 0.125
    %v74 = vmul.f32 %v72, 0.125
    %v75 = vsub.f32 %v56, %v73
    %v76 = vsub.f32 %v57, %v74
    %v77 = vmul.f32 %v75, %v75
    %v78 = vmul.f32 %v76, %v76
    %v79 = vsel %vm58, %v77, 0.0
    %v80 = vrot.slane %v79, 4
    %v81 = vadd.f32 %v79, %v80
    %v82 = vrot.slane %v81, 2
    %v83 = vadd.f32 %v81, %v82
    %v84 = vrot.slane %v83, 1
    %v85 = vadd.f32 %v83, %v84
    %v86 = vsel %vm58, %v78, 0.0
    %v87 = vrot.slane %v86, 4
    %v88 = vadd.f32 %v86, %v87
    %v89 = vrot.slane %v88, 2
    %v90 = vadd.f32 %v88, %v89
    %v91 = vrot.slane %v90, 1
    %v92 = vadd.f32 %v90, %v91
    %v93 = vmul.f32 %v85, 0.125
    %v94 = vmul.f32 %v92, 0.125
    %v95 = vadd.f32 %v93, 1e-05
    %v96 = vadd.f32 %v94, 1e-05
    %v97 = vrsqrt.pop %v95
    %v98 = vmul.f32 %v95, %v97
    %vm99 = vcmp.eq.f32.partialorder %v95, inf
    %v100 = vsel %vm99, %v95, %v98
    %vm101 = vcmp.eq.f32.partialorder %v95, 0.0
    %v102 = vand.u32 %v95, 2147483648
    %v103 = vsel %vm101, %v102, %v100
    %v104 = vrsqrt.pop %v96
    %v105 = vmul.f32 %v96, %v104
    %vm106 = vcmp.eq.f32.partialorder %v96, inf
    %v107 = vsel %vm106, %v96, %v105
    %vm108 = vcmp.eq.f32.partialorder %v96, 0.0
    %v109 = vand.u32 %v96, 2147483648
    %v110 = vsel %vm108, %v109, %v107
    %v111 = vld [vmem:[#allocation5] sm:$0x1]
    %v112 = vld [vmem:[#allocation7] sm:$0x1]
    %v113 = vrcp.pop %v103
    %v114 = vmul.f32 %v111, %v113
    %v115 = vrcp.pop %v110
    %v116 = vmul.f32 %v111, %v115
    %v119 = vlaneseq
    %v120 = vshrl.u32 %v119, 7
    %v121 = vsub.s32 0, %v120
    %v122 = vrot.slane %v114, %v121
    %v123 = vlaneseq
    %v124 = vshrl.u32 %v123, 7
    %v125 = vsub.s32 0, %v124
    %v126 = vrot.slane %v116, %v125
    %v129 = vmul.f32 %v75, %v122
    %v130 = vmul.f32 %v76, %v126
    %v132 = vlaneseq
    %v133 = vshrl.u32 %v132, 7
    %v134 = vsub.s32 0, %v133
    %v135 = vrot.slane %v112, %v134
    %v137 = vadd.f32 %v129, %v135
    %v138 = vadd.f32 %v130, %v135
    %139 = vst.msk [vmem:[#allocation8] sm:$0xff] %vm58, %v137
    %140 = vst.msk [vmem:[#allocation8 + $0x8] sm:$0xff] %vm58, %v138
    %vm141 = vcmask 24576
    %142 = vst.msk [vmem:[#allocation9] sm:$0x1] %vm141, %v73
    %143 = vst.msk [vmem:[#allocation9 + $0x1] sm:$0x1] %vm141, %v74
    %144 = vst.msk [vmem:[#allocation11] sm:$0x1] %vm141, %v103
    %145 = vst.msk [vmem:[#allocation11 + $0x1] sm:$0x1] %vm141, %v110
    // Predicated region
    $region26: #{tpu_custom_call.1} parent=1 // pred_check
      _
    $region27: #{tpu_custom_call.1} parent=1 // pred_check_branch
      %147 = sbr.rel (0) target = $region29
    $region28: #{tpu_custom_call.1} parent=1 // pred_region
      %s149 = ssub.s32 256, 256
      %150 = vsyncadd [#allocation4], %s149
      %s151 = sshll.u32 [#allocation8], 4
      %s152 = int_to_ptr.vmem [resolvable:$true] %s151
      %157 = dma.vmem_to_hbm [thread:$0]  %s152, 256, %s3, [#allocation4], 128, 128, 8
    $region29: #{tpu_custom_call.1} parent=1 // pred_fallthru
      _
    // Predicated region
    $region30: #{tpu_custom_call.1} parent=1 // pred_check
      _
    $region31: #{tpu_custom_call.1} parent=1 // pred_check_branch
      %159 = sbr.rel (0) target = $region33
    $region32: #{tpu_custom_call.1} parent=1 // pred_region
      %s161 = ssub.s32 32, 32
      %162 = vsyncadd [#allocation10], %s161
      %s163 = sshll.u32 [#allocation9], 4
      %s164 = int_to_ptr.vmem [resolvable:$true] %s163
      %169 = dma.vmem_to_hbm [thread:$0]  %s164, 32, %s4, [#allocation10], 16, 16, 1
    $region33: #{tpu_custom_call.1} parent=1 // pred_fallthru
      _
    // Predicated region
    $region34: #{tpu_custom_call.1} parent=1 // pred_check
      _
    $region35: #{tpu_custom_call.1} parent=1 // pred_check_branch
      %171 = sbr.rel (0) target = $region37
    $region36: #{tpu_custom_call.1} parent=1 // pred_region
      %s173 = ssub.s32 32, 32
      %174 = vsyncadd [#allocation10], %s173
      %s175 = sshll.u32 [#allocation11], 4
      %s176 = int_to_ptr.vmem [resolvable:$true] %s175
      %181 = dma.vmem_to_hbm [thread:$0]  %s176, 32, %s5, [#allocation10], 16, 16, 1
    $region37: #{tpu_custom_call.1} parent=1 // pred_fallthru
      _
    // Predicated region
    $region38: #{tpu_custom_call.1} parent=1 // pred_check
      _
    $region39: #{tpu_custom_call.1} parent=1 // pred_check_branch
      %183 = sbr.rel (0) target = $region41
    $region40: #{tpu_custom_call.1} parent=1 // pred_region
      %184 = dma.done [#allocation4], 256
    $region41: #{tpu_custom_call.1} parent=1 // pred_fallthru
      _
    // Predicated region
    $region42: #{tpu_custom_call.1} parent=1 // pred_check
      _
    $region43: #{tpu_custom_call.1} parent=1 // pred_check_branch
      %186 = sbr.rel (0) target = $region45
    $region44: #{tpu_custom_call.1} parent=1 // pred_region
      %187 = dma.done [#allocation10], 32
    $region45: #{tpu_custom_call.1} parent=1 // pred_fallthru
      _
    // Predicated region
    $region46: #{tpu_custom_call.1} parent=1 // pred_check
      _
    $region47: #{tpu_custom_call.1} parent=1 // pred_check_branch
      %189 = sbr.rel (0) target = $region49
    $region48: #{tpu_custom_call.1} parent=1 // pred_region
      %190 = dma.done [#allocation10], 32
    $region49: #{tpu_custom_call.1} parent=1 // pred_fallthru
      _
    %191 = vsyncpa [#allocation3], 1
    %192 = vsyncpa [#allocation6], 1
    %193 = vsyncpa [#allocation4], 1
    %194 = vsyncpa [#allocation10], 1

</llo_original>
